<compile_context>
chip_gen: v7x
topology: tpu7x:2x2x1
jax: 0.10.0
libtpu: 0.0.40
codegen_flags: <defaults>
</compile_context>

<pallas_src>
import jax
import jax.numpy as jnp
import numpy as np
from jax.experimental import pallas as pl
from jax.experimental.pallas import tpu as pltpu


def _round_up(x, m):
    return ((x + m - 1) // m) * m


# ----------------------------------------------------------------------------
# Fused kernel: all convs (im2col matmul + bias + ReLU + max-pool) + FC
# ----------------------------------------------------------------------------
def _make_fused_kernel(filter_sizes, fps, seq_len, batch_tile):
    n_conv = len(filter_sizes)
    feat_offs = [0]
    for fp in fps:
        feat_offs.append(feat_offs[-1] + fp)

    def kernel(*refs):
        x_ref = refs[0]                             # (1, bt*L + P, E) bf16
        w_refs = refs[1:1 + n_conv]                 # (k_i*E, fp_i)    bf16
        b_refs = refs[1 + n_conv:1 + 2 * n_conv]    # (1, fp_i)        f32
        fcw_ref = refs[1 + 2 * n_conv]              # (sum fp, Cp)     bf16
        fcb_ref = refs[2 + 2 * n_conv]              # (1, Cp)          f32
        o_ref = refs[3 + 2 * n_conv]                # (bt, Cp)         f32
        feat_ref = refs[4 + 2 * n_conv]             # scratch (bt, sum fp) f32

        L = seq_len
        bt = batch_tile
        N = bt * L

        # Load once; shifts/concat in f32 (cheap, robust), matmul operands in bf16.
        x = x_ref[0].astype(jnp.float32)            # (N + P, E)

        for i, k in enumerate(filter_sizes):
            t_out = L - k + 1
            # im2col: k shifted copies concatenated along the lane axis.
            cols = jnp.concatenate([x[j:j + N, :] for j in range(k)], axis=-1)
            acc = jnp.dot(cols.astype(jnp.bfloat16), w_refs[i][...],
                          preferred_element_type=jnp.float32)     # (N, fp_i)
            acc = jnp.maximum(acc + b_refs[i][...], 0.0)           # bias + ReLU
            off, fp = feat_offs[i], fps[i]
            # Global max-pool over the t_out valid time positions of each sequence
            # (rows that crossed a sequence boundary are never pooled).
            for b in range(bt):
                seg = acc[b * L: b * L + t_out, :]                 # (t_out, fp_i)
                feat_ref[b, off:off + fp] = jnp.max(seg, axis=0)

        # Dropout = identity (eval mode).  Final FC on the pooled feature slab.
        feat = feat_ref[...].astype(jnp.bfloat16)                  # (bt, sum fp)
        o_ref[...] = (jnp.dot(feat, fcw_ref[...],
                              preferred_element_type=jnp.float32)
                      + fcb_ref[...])

    return kernel


# ----------------------------------------------------------------------------
# Full forward pass
# ----------------------------------------------------------------------------
def cnn_nlp_forward(input_ids, embedding, conv_ws, conv_bs, fc_w, fc_b,
                    *, batch_tile=8):
    B, L = input_ids.shape
    E = embedding.shape[1]
    C = fc_w.shape[1]
    filter_sizes = [int(w.shape[0]) for w in conv_ws]
    num_filters = [int(w.shape[2]) for w in conv_ws]
    fps = [_round_up(f, 128) for f in num_filters]   # lane-dense feature widths
    Cp = _round_up(C, 128)                           # lane-dense logits width

    # ---- parameter packing (done once, outside the kernel; zero pads) ----
    w2d, b2d, fcw_rows = [], [], []
    off = 0
    for w, b, fp in zip(conv_ws, conv_bs, fps):
        k, _, F = w.shape
        w2d.append(jnp.pad(w.reshape(k * E, F).astype(jnp.float32),
                           ((0, 0), (0, fp - F))).astype(jnp.bfloat16))
        b2d.append(jnp.pad(b.astype(jnp.float32), ((0, 0), (0, fp - F))))
        fcw_rows.append(jnp.pad(fc_w[off:off + F, :], ((0, fp - F), (0, 0))))
        off += F
    fcw_p = jnp.pad(jnp.concatenate(fcw_rows, axis=0),
                    ((0, 0), (0, Cp - C))).astype(jnp.bfloat16)
    fcb_p = jnp.pad(fc_b.astype(jnp.float32), ((0, 0), (0, Cp - C)))

    # ---- activation: embedding gather (glue, plain JAX) + bf16 cast ----
    x = embedding[input_ids].astype(jnp.float32).astype(jnp.bfloat16)  # (B,L,E)

    # ---- batch tiling (parallel grid axis; feeds both TCs on v7x when B>=16) ----
    bt = B if B < batch_tile else batch_tile
    Bp = pl.cdiv(B, bt) * bt
    if Bp != B:
        x = jnp.pad(x, ((0, Bp - B), (0, 0), (0, 0)))
    T = Bp // bt
    P = _round_up(max(filter_sizes) - 1, 8) if max(filter_sizes) > 1 else 0
    x3 = x.reshape(T, bt * L, E)
    if P > 0:
        x3 = jnp.pad(x3, ((0, 0), (0, P), (0, 0)))   # trailing zero rows per tile
    NP = bt * L + P

    kernel = _make_fused_kernel(tuple(filter_sizes), tuple(fps), L, bt)

    in_specs = [pl.BlockSpec((1, NP, E), lambda i: (i, 0, 0))]
    in_specs += [pl.BlockSpec(w.shape, lambda i: (0, 0)) for w in w2d]
    in_specs += [pl.BlockSpec(b.shape, lambda i: (0, 0)) for b in b2d]
    in_specs += [pl.BlockSpec(fcw_p.shape, lambda i: (0, 0)),
                 pl.BlockSpec(fcb_p.shape, lambda i: (0, 0))]

    out = pl.pallas_call(
        kernel,
        out_shape=jax.ShapeDtypeStruct((Bp, Cp), jnp.float32),
        grid=(T,),
        in_specs=in_specs,
        out_specs=pl.BlockSpec((bt, Cp), lambda i: (i, 0)),
        scratch_shapes=[pltpu.VMEM((bt, sum(fps)), jnp.float32)],
        compiler_params=pltpu.CompilerParams(
            dimension_semantics=("parallel",)),
    )(x3, *w2d, *b2d, fcw_p, fcb_p)

    return out[:B, :C]


# ----------------------------------------------------------------------------
# Pure-JAX reference (same bf16-operand / f32-accumulate numerics)
# ----------------------------------------------------------------------------
def cnn_nlp_reference(input_ids, embedding, conv_ws, conv_bs, fc_w, fc_b):
    f32, bf16 = jnp.float32, jnp.bfloat16
    x = embedding[input_ids].astype(f32).astype(bf16).astype(f32)  # (B, L, E)
    pooled = []
    for w, b in zip(conv_ws, conv_bs):
        k, _, F = w.shape
        t_out = x.shape[1] - k + 1
        wq = w.astype(bf16).astype(f32)
        acc = jnp.zeros((x.shape[0], t_out, F), f32)
        for j in range(k):
            acc = acc + jnp.einsum('ble,ef->blf', x[:, j:j + t_out, :], wq[j])
        acc = jax.nn.relu(acc + b[0][None, None, :])
        pooled.append(jnp.max(acc, axis=1))
    feat = jnp.concatenate(pooled, axis=1).astype(bf16).astype(f32)
    return feat @ fc_w.astype(bf16).astype(f32) + fc_b[0][None, :]


if __name__ == "__main__":
    # Small shapes consistent with the module's forward.
    vocab_size = 50
    embed_dim = 32
    seq_len = 16
    batch = 2
    filter_sizes = [3, 4, 5]
    num_filters = [16, 16, 16]
    num_classes = 2

    key = jax.random.PRNGKey(0)
    keys = jax.random.split(key, 3 + 2 * len(filter_sizes) + 2)

    # Deterministic synthetic parameters (no checkpoint load).
    embedding = 0.1 * jax.random.normal(keys[0], (vocab_size, embed_dim),
                                        dtype=jnp.float32)
    input_ids = jax.random.randint(keys[1], (batch, seq_len), 0, vocab_size,
                                   dtype=jnp.int32)

    conv_ws, conv_bs = [], []
    for i, (k, f) in enumerate(zip(filter_sizes, num_filters)):
        conv_ws.append(0.05 * jax.random.normal(keys[2 + 2 * i], (k, embed_dim, f),
                                                dtype=jnp.float32))
        conv_bs.append(0.01 * jax.random.normal(keys[3 + 2 * i], (1, f),
                                                dtype=jnp.float32))

    total_filters = int(np.sum(num_filters))
    fc_w = 0.05 * jax.random.normal(keys[-2], (total_filters, num_classes),
                                    dtype=jnp.float32)
    fc_b = 0.01 * jax.random.normal(keys[-1], (1, num_classes),
                                    dtype=jnp.float32)

    logits = cnn_nlp_forward(input_ids, embedding, conv_ws, conv_bs, fc_w, fc_b)
    logits = jax.block_until_ready(logits)

    ref = cnn_nlp_reference(input_ids, embedding, conv_ws, conv_bs, fc_w, fc_b)
    np.testing.assert_allclose(np.asarray(logits), np.asarray(ref),
                               rtol=1e-4, atol=1e-4)
    assert logits.shape == (batch, num_classes)

    print("KERNEL_OK")
</pallas_src>

<mosaic_0001>
module attributes {stable_mosaic.version = 11 : i64} {
  func.func @kernel(%arg0: i32, %arg1: memref<1x40x32xbf16, #tpu.memory_space<vmem>>, %arg2: memref<96x128xbf16, #tpu.memory_space<vmem>>, %arg3: memref<128x128xbf16, #tpu.memory_space<vmem>>, %arg4: memref<160x128xbf16, #tpu.memory_space<vmem>>, %arg5: memref<1x128xf32, #tpu.memory_space<vmem>>, %arg6: memref<1x128xf32, #tpu.memory_space<vmem>>, %arg7: memref<1x128xf32, #tpu.memory_space<vmem>>, %arg8: memref<384x128xbf16, #tpu.memory_space<vmem>>, %arg9: memref<1x128xf32, #tpu.memory_space<vmem>>, %arg10: memref<2x128xf32, #tpu.memory_space<vmem>>, %arg11: memref<2x384xf32, #tpu.memory_space<vmem>>) attributes {dimension_semantics = [#tpu.dimension_semantics<parallel>], iteration_bounds = array<i64: 1>, scalar_prefetch = 0 : i64, scratch_operands = 1 : i64, tpu.core_type = #tpu.core_type<tc>, window_params = [{transform_indices = @transform_0, window_bounds = array<i64: 1, 40, 32>}, {pipeline_mode = #tpu.pipeline_mode<synchronous>, transform_indices = @transform_1, window_bounds = array<i64: 96, 128>}, {pipeline_mode = #tpu.pipeline_mode<synchronous>, transform_indices = @transform_2, window_bounds = array<i64: 128, 128>}, {pipeline_mode = #tpu.pipeline_mode<synchronous>, transform_indices = @transform_3, window_bounds = array<i64: 160, 128>}, {pipeline_mode = #tpu.pipeline_mode<synchronous>, transform_indices = @transform_4, window_bounds = array<i64: 1, 128>}, {pipeline_mode = #tpu.pipeline_mode<synchronous>, transform_indices = @transform_5, window_bounds = array<i64: 1, 128>}, {pipeline_mode = #tpu.pipeline_mode<synchronous>, transform_indices = @transform_6, window_bounds = array<i64: 1, 128>}, {pipeline_mode = #tpu.pipeline_mode<synchronous>, transform_indices = @transform_7, window_bounds = array<i64: 384, 128>}, {pipeline_mode = #tpu.pipeline_mode<synchronous>, transform_indices = @transform_8, window_bounds = array<i64: 1, 128>}, {transform_indices = @transform_9, window_bounds = array<i64: 2, 128>}]} {
    %c0 = arith.constant 0 : index
    %c0_0 = arith.constant 0 : index
    %c0_1 = arith.constant 0 : index
    %0 = vector.load %arg1[%c0, %c0_0, %c0_1] : memref<1x40x32xbf16, #tpu.memory_space<vmem>>, vector<1x40x32xbf16>
    %1 = vector.shape_cast %0 : vector<1x40x32xbf16> to vector<40x32xbf16>
    %2 = arith.extf %1 : vector<40x32xbf16> to vector<40x32xf32>
    %3 = vector.extract_strided_slice %2 {offsets = [0, 0], sizes = [32, 32], strides = [1, 1]} : vector<40x32xf32> to vector<32x32xf32>
    %4 = vector.extract_strided_slice %2 {offsets = [1, 0], sizes = [32, 32], strides = [1, 1]} : vector<40x32xf32> to vector<32x32xf32>
    %5 = vector.extract_strided_slice %2 {offsets = [2, 0], sizes = [32, 32], strides = [1, 1]} : vector<40x32xf32> to vector<32x32xf32>
    %6 = tpu.concatenate %3, %4, %5 in 1 : vector<32x32xf32>, vector<32x32xf32>, vector<32x32xf32> -> vector<32x96xf32>
    %7 = arith.truncf %6 : vector<32x96xf32> to vector<32x96xbf16>
    %c0_2 = arith.constant 0 : index
    %c0_3 = arith.constant 0 : index
    %8 = vector.load %arg2[%c0_2, %c0_3] : memref<96x128xbf16, #tpu.memory_space<vmem>>, vector<96x128xbf16>
    %cst = arith.constant dense<0.000000e+00> : vector<32x128xf32>
    %9 = tpu.matmul %7, %8, %cst {dimension_numbers = #tpu.dot_dimension_numbers<[1], [0], [0], [1], [0, 0, 1, 1], [], []>} : vector<32x96xbf16>, vector<96x128xbf16>, vector<32x128xf32> -> vector<32x128xf32>
    %c0_4 = arith.constant 0 : index
    %c0_5 = arith.constant 0 : index
    %10 = vector.load %arg5[%c0_4, %c0_5] : memref<1x128xf32, #tpu.memory_space<vmem>>, vector<1x128xf32>
    %11 = vector.broadcast %10 : vector<1x128xf32> to vector<32x128xf32>
    %12 = arith.addf %9, %11 : vector<32x128xf32>
    %cst_6 = arith.constant 0.000000e+00 : f32
    %13 = vector.broadcast %cst_6 : f32 to vector<32x128xf32>
    %14 = arith.maximumf %12, %13 : vector<32x128xf32>
    %15 = vector.extract_strided_slice %14 {offsets = [0, 0], sizes = [14, 128], strides = [1, 1]} : vector<32x128xf32> to vector<14x128xf32>
    %cst_7 = arith.constant dense<0xFF800000> : vector<128xf32>
    %16 = vector.multi_reduction <maximumf>, %15, %cst_7 [0] : vector<14x128xf32> to vector<128xf32>
    %c0_8 = arith.constant 0 : index
    %c0_9 = arith.constant 0 : index
    %17 = vector.load %arg11[%c0_8, %c0_9] : memref<2x384xf32, #tpu.memory_space<vmem>>, vector<1x128xf32>
    %18 = vector.shape_cast %17 : vector<1x128xf32> to vector<128xf32>
    %19 = vector.shape_cast %16 : vector<128xf32> to vector<1x128xf32>
    tpu.vector_store %arg11[%c0_8, %c0_9], %19 {strides = array<i32>} : memref<2x384xf32, #tpu.memory_space<vmem>>, vector<1x128xf32>,
    %20 = vector.extract_strided_slice %14 {offsets = [16, 0], sizes = [14, 128], strides = [1, 1]} : vector<32x128xf32> to vector<14x128xf32>
    %cst_10 = arith.constant dense<0xFF800000> : vector<128xf32>
    %21 = vector.multi_reduction <maximumf>, %20, %cst_10 [0] : vector<14x128xf32> to vector<128xf32>
    %c1 = arith.constant 1 : index
    %c0_11 = arith.constant 0 : index
    %22 = vector.load %arg11[%c1, %c0_11] : memref<2x384xf32, #tpu.memory_space<vmem>>, vector<1x128xf32>
    %23 = vector.shape_cast %22 : vector<1x128xf32> to vector<128xf32>
    %24 = vector.shape_cast %21 : vector<128xf32> to vector<1x128xf32>
    tpu.vector_store %arg11[%c1, %c0_11], %24 {strides = array<i32>} : memref<2x384xf32, #tpu.memory_space<vmem>>, vector<1x128xf32>,
    %25 = vector.extract_strided_slice %2 {offsets = [0, 0], sizes = [32, 32], strides = [1, 1]} : vector<40x32xf32> to vector<32x32xf32>
    %26 = vector.extract_strided_slice %2 {offsets = [1, 0], sizes = [32, 32], strides = [1, 1]} : vector<40x32xf32> to vector<32x32xf32>
    %27 = vector.extract_strided_slice %2 {offsets = [2, 0], sizes = [32, 32], strides = [1, 1]} : vector<40x32xf32> to vector<32x32xf32>
    %28 = vector.extract_strided_slice %2 {offsets = [3, 0], sizes = [32, 32], strides = [1, 1]} : vector<40x32xf32> to vector<32x32xf32>
    %29 = tpu.concatenate %25, %26, %27, %28 in 1 : vector<32x32xf32>, vector<32x32xf32>, vector<32x32xf32>, vector<32x32xf32> -> vector<32x128xf32>
    %30 = arith.truncf %29 : vector<32x128xf32> to vector<32x128xbf16>
    %c0_12 = arith.constant 0 : index
    %c0_13 = arith.constant 0 : index
    %31 = vector.load %arg3[%c0_12, %c0_13] : memref<128x128xbf16, #tpu.memory_space<vmem>>, vector<128x128xbf16>
    %cst_14 = arith.constant dense<0.000000e+00> : vector<32x128xf32>
    %32 = tpu.matmul %30, %31, %cst_14 {dimension_numbers = #tpu.dot_dimension_numbers<[1], [0], [0], [1], [0, 0, 1, 1], [], []>} : vector<32x128xbf16>, vector<128x128xbf16>, vector<32x128xf32> -> vector<32x128xf32>
    %c0_15 = arith.constant 0 : index
    %c0_16 = arith.constant 0 : index
    %33 = vector.load %arg6[%c0_15, %c0_16] : memref<1x128xf32, #tpu.memory_space<vmem>>, vector<1x128xf32>
    %34 = vector.broadcast %33 : vector<1x128xf32> to vector<32x128xf32>
    %35 = arith.addf %32, %34 : vector<32x128xf32>
    %cst_17 = arith.constant 0.000000e+00 : f32
    %36 = vector.broadcast %cst_17 : f32 to vector<32x128xf32>
    %37 = arith.maximumf %35, %36 : vector<32x128xf32>
    %38 = vector.extract_strided_slice %37 {offsets = [0, 0], sizes = [13, 128], strides = [1, 1]} : vector<32x128xf32> to vector<13x128xf32>
    %cst_18 = arith.constant dense<0xFF800000> : vector<128xf32>
    %39 = vector.multi_reduction <maximumf>, %38, %cst_18 [0] : vector<13x128xf32> to vector<128xf32>
    %c0_19 = arith.constant 0 : index
    %c128 = arith.constant 128 : index
    %40 = vector.load %arg11[%c0_19, %c128] : memref<2x384xf32, #tpu.memory_space<vmem>>, vector<1x128xf32>
    %41 = vector.shape_cast %40 : vector<1x128xf32> to vector<128xf32>
    %42 = vector.shape_cast %39 : vector<128xf32> to vector<1x128xf32>
    tpu.vector_store %arg11[%c0_19, %c128], %42 {strides = array<i32>} : memref<2x384xf32, #tpu.memory_space<vmem>>, vector<1x128xf32>,
    %43 = vector.extract_strided_slice %37 {offsets = [16, 0], sizes = [13, 128], strides = [1, 1]} : vector<32x128xf32> to vector<13x128xf32>
    %cst_20 = arith.constant dense<0xFF800000> : vector<128xf32>
    %44 = vector.multi_reduction <maximumf>, %43, %cst_20 [0] : vector<13x128xf32> to vector<128xf32>
    %c1_21 = arith.constant 1 : index
    %c128_22 = arith.constant 128 : index
    %45 = vector.load %arg11[%c1_21, %c128_22] : memref<2x384xf32, #tpu.memory_space<vmem>>, vector<1x128xf32>
    %46 = vector.shape_cast %45 : vector<1x128xf32> to vector<128xf32>
    %47 = vector.shape_cast %44 : vector<128xf32> to vector<1x128xf32>
    tpu.vector_store %arg11[%c1_21, %c128_22], %47 {strides = array<i32>} : memref<2x384xf32, #tpu.memory_space<vmem>>, vector<1x128xf32>,
    %48 = vector.extract_strided_slice %2 {offsets = [0, 0], sizes = [32, 32], strides = [1, 1]} : vector<40x32xf32> to vector<32x32xf32>
    %49 = vector.extract_strided_slice %2 {offsets = [1, 0], sizes = [32, 32], strides = [1, 1]} : vector<40x32xf32> to vector<32x32xf32>
    %50 = vector.extract_strided_slice %2 {offsets = [2, 0], sizes = [32, 32], strides = [1, 1]} : vector<40x32xf32> to vector<32x32xf32>
    %51 = vector.extract_strided_slice %2 {offsets = [3, 0], sizes = [32, 32], strides = [1, 1]} : vector<40x32xf32> to vector<32x32xf32>
    %52 = vector.extract_strided_slice %2 {offsets = [4, 0], sizes = [32, 32], strides = [1, 1]} : vector<40x32xf32> to vector<32x32xf32>
    %53 = tpu.concatenate %48, %49, %50, %51, %52 in 1 : vector<32x32xf32>, vector<32x32xf32>, vector<32x32xf32>, vector<32x32xf32>, vector<32x32xf32> -> vector<32x160xf32>
    %54 = arith.truncf %53 : vector<32x160xf32> to vector<32x160xbf16>
    %c0_23 = arith.constant 0 : index
    %c0_24 = arith.constant 0 : index
    %55 = vector.load %arg4[%c0_23, %c0_24] : memref<160x128xbf16, #tpu.memory_space<vmem>>, vector<160x128xbf16>
    %cst_25 = arith.constant dense<0.000000e+00> : vector<32x128xf32>
    %56 = tpu.matmul %54, %55, %cst_25 {dimension_numbers = #tpu.dot_dimension_numbers<[1], [0], [0], [1], [0, 0, 1, 1], [], []>} : vector<32x160xbf16>, vector<160x128xbf16>, vector<32x128xf32> -> vector<32x128xf32>
    %c0_26 = arith.constant 0 : index
    %c0_27 = arith.constant 0 : index
    %57 = vector.load %arg7[%c0_26, %c0_27] : memref<1x128xf32, #tpu.memory_space<vmem>>, vector<1x128xf32>
    %58 = vector.broadcast %57 : vector<1x128xf32> to vector<32x128xf32>
    %59 = arith.addf %56, %58 : vector<32x128xf32>
    %cst_28 = arith.constant 0.000000e+00 : f32
    %60 = vector.broadcast %cst_28 : f32 to vector<32x128xf32>
    %61 = arith.maximumf %59, %60 : vector<32x128xf32>
    %62 = vector.extract_strided_slice %61 {offsets = [0, 0], sizes = [12, 128], strides = [1, 1]} : vector<32x128xf32> to vector<12x128xf32>
    %cst_29 = arith.constant dense<0xFF800000> : vector<128xf32>
    %63 = vector.multi_reduction <maximumf>, %62, %cst_29 [0] : vector<12x128xf32> to vector<128xf32>
    %c0_30 = arith.constant 0 : index
    %c256 = arith.constant 256 : index
    %64 = vector.load %arg11[%c0_30, %c256] : memref<2x384xf32, #tpu.memory_space<vmem>>, vector<1x128xf32>
    %65 = vector.shape_cast %64 : vector<1x128xf32> to vector<128xf32>
    %66 = vector.shape_cast %63 : vector<128xf32> to vector<1x128xf32>
    tpu.vector_store %arg11[%c0_30, %c256], %66 {strides = array<i32>} : memref<2x384xf32, #tpu.memory_space<vmem>>, vector<1x128xf32>,
    %67 = vector.extract_strided_slice %61 {offsets = [16, 0], sizes = [12, 128], strides = [1, 1]} : vector<32x128xf32> to vector<12x128xf32>
    %cst_31 = arith.constant dense<0xFF800000> : vector<128xf32>
    %68 = vector.multi_reduction <maximumf>, %67, %cst_31 [0] : vector<12x128xf32> to vector<128xf32>
    %c1_32 = arith.constant 1 : index
    %c256_33 = arith.constant 256 : index
    %69 = vector.load %arg11[%c1_32, %c256_33] : memref<2x384xf32, #tpu.memory_space<vmem>>, vector<1x128xf32>
    %70 = vector.shape_cast %69 : vector<1x128xf32> to vector<128xf32>
    %71 = vector.shape_cast %68 : vector<128xf32> to vector<1x128xf32>
    tpu.vector_store %arg11[%c1_32, %c256_33], %71 {strides = array<i32>} : memref<2x384xf32, #tpu.memory_space<vmem>>, vector<1x128xf32>,
    %c0_34 = arith.constant 0 : index
    %c0_35 = arith.constant 0 : index
    %72 = vector.load %arg11[%c0_34, %c0_35] : memref<2x384xf32, #tpu.memory_space<vmem>>, vector<2x384xf32>
    %73 = arith.truncf %72 : vector<2x384xf32> to vector<2x384xbf16>
    %c0_36 = arith.constant 0 : index
    %c0_37 = arith.constant 0 : index
    %74 = vector.load %arg8[%c0_36, %c0_37] : memref<384x128xbf16, #tpu.memory_space<vmem>>, vector<384x128xbf16>
    %cst_38 = arith.constant dense<0.000000e+00> : vector<2x128xf32>
    %75 = tpu.matmul %73, %74, %cst_38 {dimension_numbers = #tpu.dot_dimension_numbers<[1], [0], [0], [1], [0, 0, 1, 1], [], []>} : vector<2x384xbf16>, vector<384x128xbf16>, vector<2x128xf32> -> vector<2x128xf32>
    %c0_39 = arith.constant 0 : index
    %c0_40 = arith.constant 0 : index
    %76 = vector.load %arg9[%c0_39, %c0_40] : memref<1x128xf32, #tpu.memory_space<vmem>>, vector<1x128xf32>
    %77 = vector.broadcast %76 : vector<1x128xf32> to vector<2x128xf32>
    %78 = arith.addf %75, %77 : vector<2x128xf32>
    %c0_41 = arith.constant 0 : index
    %c0_42 = arith.constant 0 : index
    %79 = vector.load %arg10[%c0_41, %c0_42] : memref<2x128xf32, #tpu.memory_space<vmem>>, vector<2x128xf32>
    tpu.vector_store %arg10[%c0_41, %c0_42], %78 {strides = array<i32>} : memref<2x128xf32, #tpu.memory_space<vmem>>, vector<2x128xf32>,
    return
  }
  func.func @transform_0(%arg0: i32) -> (i32, i32, i32) {
    %c0_i32 = arith.constant 0 : i32
    %c0_i32_0 = arith.constant 0 : i32
    %c0_i32_1 = arith.constant 0 : i32
    return %arg0, %c0_i32, %c0_i32_0 : i32, i32, i32
  }
  func.func @transform_1(%arg0: i32) -> (i32, i32) {
    %c0_i32 = arith.constant 0 : i32
    %c0_i32_0 = arith.constant 0 : i32
    %c0_i32_1 = arith.constant 0 : i32
    return %c0_i32, %c0_i32_0 : i32, i32
  }
  func.func @transform_2(%arg0: i32) -> (i32, i32) {
    %c0_i32 = arith.constant 0 : i32
    %c0_i32_0 = arith.constant 0 : i32
    %c0_i32_1 = arith.constant 0 : i32
    return %c0_i32, %c0_i32_0 : i32, i32
  }
  func.func @transform_3(%arg0: i32) -> (i32, i32) {
    %c0_i32 = arith.constant 0 : i32
    %c0_i32_0 = arith.constant 0 : i32
    %c0_i32_1 = arith.constant 0 : i32
    return %c0_i32, %c0_i32_0 : i32, i32
  }
  func.func @transform_4(%arg0: i32) -> (i32, i32) {
    %c0_i32 = arith.constant 0 : i32
    %c0_i32_0 = arith.constant 0 : i32
    %c0_i32_1 = arith.constant 0 : i32
    return %c0_i32, %c0_i32_0 : i32, i32
  }
  func.func @transform_5(%arg0: i32) -> (i32, i32) {
    %c0_i32 = arith.constant 0 : i32
    %c0_i32_0 = arith.constant 0 : i32
    %c0_i32_1 = arith.constant 0 : i32
    return %c0_i32, %c0_i32_0 : i32, i32
  }
  func.func @transform_6(%arg0: i32) -> (i32, i32) {
    %c0_i32 = arith.constant 0 : i32
    %c0_i32_0 = arith.constant 0 : i32
    %c0_i32_1 = arith.constant 0 : i32
    return %c0_i32, %c0_i32_0 : i32, i32
  }
  func.func @transform_7(%arg0: i32) -> (i32, i32) {
    %c0_i32 = arith.constant 0 : i32
    %c0_i32_0 = arith.constant 0 : i32
    %c0_i32_1 = arith.constant 0 : i32
    return %c0_i32, %c0_i32_0 : i32, i32
  }
  func.func @transform_8(%arg0: i32) -> (i32, i32) {
    %c0_i32 = arith.constant 0 : i32
    %c0_i32_0 = arith.constant 0 : i32
    %c0_i32_1 = arith.constant 0 : i32
    return %c0_i32, %c0_i32_0 : i32, i32
  }
  func.func @transform_9(%arg0: i32) -> (i32, i32) {
    %c0_i32 = arith.constant 0 : i32
    %c0_i32_0 = arith.constant 0 : i32
    return %arg0, %c0_i32 : i32, i32
  }
}

</mosaic_0001>

<llo_original>
// kernel: tpu_custom_call.1
$region0: #{tpu_custom_call.1}
  #allocation0 [shape = 'u32[]', space=smem, size = 0x4, offset = 0x4, fixed_abs, tag = 'smem constant byte address 0x4 - core index']
  #allocation1 [shape = 'u32[144,128]{1,0:T(1,128)}', space=vmem, size = 0x12000, scoped, tag = 'internal scratch']
  #allocation2 [shape = 'f32[2,384]{1,0:T(2,128)}', space=vmem, size = 0xc00, scoped, tag = 'scratch operand']
  %s0 = inlined_call_operand.vmem [shape: bf16[1,40,32], index: 0, kind: input, shape index: {}]
  %s1 = inlined_call_operand.hbm [shape: bf16[96,128], index: 1, kind: input, shape index: {}]
  %s2 = inlined_call_operand.hbm [shape: bf16[128,128], index: 2, kind: input, shape index: {}]
  %s3 = inlined_call_operand.hbm [shape: bf16[160,128], index: 3, kind: input, shape index: {}]
  %s4 = inlined_call_operand.vmem [shape: f32[1,128], index: 4, kind: input, shape index: {}]
  %s5 = inlined_call_operand.vmem [shape: f32[1,128], index: 5, kind: input, shape index: {}]
  %s6 = inlined_call_operand.vmem [shape: f32[1,128], index: 6, kind: input, shape index: {}]
  %s7 = inlined_call_operand.hbm [shape: bf16[384,128], index: 7, kind: input, shape index: {}]
  %s8 = inlined_call_operand.vmem [shape: f32[1,128], index: 8, kind: input, shape index: {}]
  %s9 = inlined_call_operand.hbm [shape: f32[2,128], index: 9, kind: output, shape index: {}]
  %s10 = sld [smem:[#allocation0]]
  $region62: #{tpu_custom_call.1} parent=0
    _
  %s12 = ssub.s32 1, %s10
  %s13 = scalar_select 0, %s12, %s10
  $region1: #{tpu_custom_call.1} parent=0
    #allocation3 [shape = 'u8[24576]{0}', space=vmem, size = 0x6000, scoped, tag = 'input window, operand 1, single buffered']
    #allocation4 [shape = 's32[1]{0}', space=sflag, size = 0x4, scoped, tag = 'scoped memory for tpu_custom_call.1']
    #allocation5 [shape = 's32[1]{0}', space=sflag, size = 0x4, scoped, tag = 'scoped memory for tpu_custom_call.1']
    #allocation6 [shape = 'u8[32768]{0}', space=vmem, size = 0x8000, scoped, tag = 'input window, operand 2, single buffered']
    #allocation7 [shape = 's32[1]{0}', space=sflag, size = 0x4, scoped, tag = 'scoped memory for tpu_custom_call.1']
    #allocation8 [shape = 'u8[40960]{0}', space=vmem, size = 0xa000, scoped, tag = 'input window, operand 3, single buffered']
    #allocation9 [shape = 'u8[98304]{0}', space=vmem, size = 0x18000, scoped, tag = 'input window, operand 7, single buffered']
    #allocation10 [shape = 's32[1]{0}', space=sflag, size = 0x4, scoped, tag = 'scoped memory for tpu_custom_call.1']
    #allocation11 [shape = 'u8[1024]{0}', space=vmem, size = 0x400, scoped, tag = 'output window, operand 0, single buffered']
    %14 = vsyncpa [#allocation4], 0
    %15 = vsyncpa [#allocation7], 0
    %16 = vsyncpa [#allocation10], 0
    %17 = vsyncpa [#allocation5], 0
    // Predicated region
    $region2: #{tpu_custom_call.1} parent=1 // pred_check
      _
    $region3: #{tpu_custom_call.1} parent=1 // pred_check_branch
      %19 = sbr.rel (0) target = $region5
    $region4: #{tpu_custom_call.1} parent=1 // pred_region
      _
    $region5: #{tpu_custom_call.1} parent=1 // pred_fallthru
      _
    // Predicated region
    $region6: #{tpu_custom_call.1} parent=1 // pred_check
      _
    $region7: #{tpu_custom_call.1} parent=1 // pred_check_branch
      %21 = sbr.rel (0) target = $region9
    $region8: #{tpu_custom_call.1} parent=1 // pred_region
      %s23 = ssub.s32 768, 768
      %24 = vsyncadd [#allocation4], %s23
      %s25 = sshll.u32 [#allocation3], 4
      %s26 = int_to_ptr.vmem [resolvable:$true] %s25
      %31 = dma.hbm_to_vmem [thread:$0]  %s1, 768, %s26, [#allocation4], 64, 64, 4
    $region9: #{tpu_custom_call.1} parent=1 // pred_fallthru
      _
    // Predicated region
    $region10: #{tpu_custom_call.1} parent=1 // pred_check
      _
    $region11: #{tpu_custom_call.1} parent=1 // pred_check_branch
      %33 = sbr.rel (0) target = $region13
    $region12: #{tpu_custom_call.1} parent=1 // pred_region
      %s35 = ssub.s32 1024, 1024
      %36 = vsyncadd [#allocation7], %s35
      %s37 = sshll.u32 [#allocation6], 4
      %s38 = int_to_ptr.vmem [resolvable:$true] %s37
      %43 = dma.hbm_to_vmem [thread:$0]  %s2, 1024, %s38, [#allocation7], 64, 64, 4
    $region13: #{tpu_custom_call.1} parent=1 // pred_fallthru
      _
    // Predicated region
    $region14: #{tpu_custom_call.1} parent=1 // pred_check
      _
    $region15: #{tpu_custom_call.1} parent=1 // pred_check_branch
      %45 = sbr.rel (0) target = $region17
    $region16: #{tpu_custom_call.1} parent=1 // pred_region
      %s47 = ssub.s32 1280, 1280
      %48 = vsyncadd [#allocation7], %s47
      %s49 = sshll.u32 [#allocation8], 4
      %s50 = int_to_ptr.vmem [resolvable:$true] %s49
      %55 = dma.hbm_to_vmem [thread:$0]  %s3, 1280, %s50, [#allocation7], 64, 64, 4
    $region17: #{tpu_custom_call.1} parent=1 // pred_fallthru
      _
    // Predicated region
    $region18: #{tpu_custom_call.1} parent=1 // pred_check
      _
    $region19: #{tpu_custom_call.1} parent=1 // pred_check_branch
      %57 = sbr.rel (0) target = $region21
    $region20: #{tpu_custom_call.1} parent=1 // pred_region
      _
    $region21: #{tpu_custom_call.1} parent=1 // pred_fallthru
      _
    // Predicated region
    $region22: #{tpu_custom_call.1} parent=1 // pred_check
      _
    $region23: #{tpu_custom_call.1} parent=1 // pred_check_branch
      %59 = sbr.rel (0) target = $region25
    $region24: #{tpu_custom_call.1} parent=1 // pred_region
      _
    $region25: #{tpu_custom_call.1} parent=1 // pred_fallthru
      _
    // Predicated region
    $region26: #{tpu_custom_call.1} parent=1 // pred_check
      _
    $region27: #{tpu_custom_call.1} parent=1 // pred_check_branch
      %61 = sbr.rel (0) target = $region29
    $region28: #{tpu_custom_call.1} parent=1 // pred_region
      _
    $region29: #{tpu_custom_call.1} parent=1 // pred_fallthru
      _
    // Predicated region
    $region30: #{tpu_custom_call.1} parent=1 // pred_check
      _
    $region31: #{tpu_custom_call.1} parent=1 // pred_check_branch
      %63 = sbr.rel (0) target = $region33
    $region32: #{tpu_custom_call.1} parent=1 // pred_region
      %s65 = ssub.s32 3072, 3072
      %66 = vsyncadd [#allocation10], %s65
      %s67 = sshll.u32 [#allocation9], 4
      %s68 = int_to_ptr.vmem [resolvable:$true] %s67
      %73 = dma.hbm_to_vmem [thread:$0]  %s7, 3072, %s68, [#allocation10], 64, 64, 4
    $region33: #{tpu_custom_call.1} parent=1 // pred_fallthru
      _
    // Predicated region
    $region34: #{tpu_custom_call.1} parent=1 // pred_check
      _
    $region35: #{tpu_custom_call.1} parent=1 // pred_check_branch
      %75 = sbr.rel (0) target = $region37
    $region36: #{tpu_custom_call.1} parent=1 // pred_region
      _
    $region37: #{tpu_custom_call.1} parent=1 // pred_fallthru
      _
    // Predicated region
    $region38: #{tpu_custom_call.1} parent=1 // pred_check
      _
    $region39: #{tpu_custom_call.1} parent=1 // pred_check_branch
      %77 = sbr.rel (0) target = $region41
    $region40: #{tpu_custom_call.1} parent=1 // pred_region
      %78 = dma.done [#allocation4], 768
    $region41: #{tpu_custom_call.1} parent=1 // pred_fallthru
      _
    // Predicated region
    $region42: #{tpu_custom_call.1} parent=1 // pred_check
      _
    $region43: #{tpu_custom_call.1} parent=1 // pred_check_branch
      %80 = sbr.rel (0) target = $region45
    $region44: #{tpu_custom_call.1} parent=1 // pred_region
      %81 = dma.done [#allocation7], 1024
    $region45: #{tpu_custom_call.1} parent=1 // pred_fallthru
      _
    // Predicated region
    $region46: #{tpu_custom_call.1} parent=1 // pred_check
      _
    $region47: #{tpu_custom_call.1} parent=1 // pred_check_branch
      %83 = sbr.rel (0) target = $region49
    $region48: #{tpu_custom_call.1} parent=1 // pred_region
      %84 = dma.done [#allocation7], 1280
    $region49: #{tpu_custom_call.1} parent=1 // pred_fallthru
      _
    // Predicated region
    $region50: #{tpu_custom_call.1} parent=1 // pred_check
      _
    $region51: #{tpu_custom_call.1} parent=1 // pred_check_branch
      %86 = sbr.rel (0) target = $region53
    $region52: #{tpu_custom_call.1} parent=1 // pred_region
      %87 = dma.done [#allocation10], 3072
    $region53: #{tpu_custom_call.1} parent=1 // pred_fallthru
      _
    %v89 = vld [vmem:[%s0] sm:$0xf]
    %v90 = vld [vmem:[%s0 + $0x4] sm:$0xf]
    %v91 = vld [vmem:[%s0 + $0x8] sm:$0xf]
    %v92 = vld [vmem:[%s0 + $0xc] sm:$0xf]
    %v93 = vld [vmem:[%s0 + $0x10] sm:$0xf]
    %v94 = vunpack.c.l.bf16 %v89
    %v95 = vunpack.c.l.bf16 %v90
    %v96 = vunpack.c.l.bf16 %v91
    %v97 = vunpack.c.l.bf16 %v92
    %v98 = vunpack.c.l.bf16 %v93
    %vm104 = vcmask 1046528
    %v105 = vrot.slane %v94, 1
    %v106 = vrot.slane %v95, 1
    %v107 = vsel %vm104, %v105, %v106
    %v108 = vrot.slane %v96, 1
    %v109 = vsel %vm104, %v106, %v108
    %v110 = vrot.slane %v97, 1
    %v111 = vsel %vm104, %v108, %v110
    %v112 = vrot.slane %v98, 1
    %v113 = vsel %vm104, %v110, %v112
    %114 = vrot.lane.b32.xlu0 %v107, 32
    %v115 = vpop.permute.xlu0 %114
    %116 = vrot.lane.b32.xlu0 %v109, 32
    %v117 = vpop.permute.xlu0 %116
    %118 = vrot.lane.b32.xlu0 %v111, 32
    %v119 = vpop.permute.xlu0 %118
    %120 = vrot.lane.b32.xlu0 %v113, 32
    %v121 = vpop.permute.xlu0 %120
    %vm126 = vcmask 1045504
    %v127 = vrot.slane %v94, 2
    %v128 = vrot.slane %v95, 2
    %v129 = vsel %vm126, %v127, %v128
    %v130 = vrot.slane %v96, 2
    %v131 = vsel %vm126, %v128, %v130
    %v132 = vrot.slane %v97, 2
    %v133 = vsel %vm126, %v130, %v132
    %v134 = vrot.slane %v98, 2
    %v135 = vsel %vm126, %v132, %v134
    %136 = vrot.lane.b32.xlu0 %v129, 64
    %v137 = vpop.permute.xlu0 %136
    %138 = vrot.lane.b32.xlu0 %v131, 64
    %v139 = vpop.permute.xlu0 %138
    %140 = vrot.lane.b32.xlu0 %v133, 64
    %v141 = vpop.permute.xlu0 %140
    %142 = vrot.lane.b32.xlu0 %v135, 64
    %v143 = vpop.permute.xlu0 %142
    %vm148 = vcmask 261120
    %v149 = vsel %vm148, %v94, %v115
    %v150 = vsel %vm148, %v95, %v117
    %v151 = vsel %vm148, %v96, %v119
    %v152 = vsel %vm148, %v97, %v121
    %vm153 = vcmask 523264
    %v154 = vsel %vm153, %v149, %v137
    %v155 = vsel %vm153, %v150, %v139
    %v156 = vsel %vm153, %v151, %v141
    %v157 = vsel %vm153, %v152, %v143
    %v158 = vpack.c.bf16 %v155, %v154
    %v159 = vpack.c.bf16 %v157, %v156
    %v160 = vld [vmem:[#allocation3] sm:$0xf]
    %v161 = vld [vmem:[#allocation3 + $0x4] sm:$0xf]
    %v162 = vld [vmem:[#allocation3 + $0x8] sm:$0xf]
    %v163 = vld [vmem:[#allocation3 + $0xc] sm:$0xf]
    %v164 = vld [vmem:[#allocation3 + $0x10] sm:$0xf]
    %v165 = vld [vmem:[#allocation3 + $0x14] sm:$0xf]
    %v166 = vld [vmem:[#allocation3 + $0x18] sm:$0xf]
    %v167 = vld [vmem:[#allocation3 + $0x1c] sm:$0xf]
    %v168 = vld [vmem:[#allocation3 + $0x20] sm:$0xf]
    %v169 = vld [vmem:[#allocation3 + $0x24] sm:$0xf]
    %v170 = vld [vmem:[#allocation3 + $0x28] sm:$0xf]
    %v171 = vld [vmem:[#allocation3 + $0x2c] sm:$0xf]
    %v172 = vld [vmem:[%s4] sm:$0x1]
    %v174 = vlaneseq
    %v175 = vshrl.u32 %v174, 7
    %v176 = vsub.s32 0, %v175
    %v177 = vrot.slane %v172, %v176
    %v191 = vunpack.c.l.b16 %v160
    %v192 = vunpack.c.l.b16 %v161
    %v193 = vunpack.c.l.b16 %v162
    %v194 = vunpack.c.l.b16 %v163
    %v195 = vunpack.c.l.b16 %v164
    %v196 = vunpack.c.l.b16 %v165
    %v197 = vunpack.c.l.b16 %v166
    %v198 = vunpack.c.l.b16 %v167
    %v199 = vunpack.c.l.b16 %v168
    %v200 = vunpack.c.l.b16 %v169
    %v201 = vunpack.c.l.b16 %v170
    %v202 = vunpack.c.l.b16 %v171
    %v203 = vpack.c.b16 %v192, %v191
    %v204 = vpack.c.b16 %v194, %v193
    %v205 = vpack.c.b16 %v196, %v195
    %v206 = vpack.c.b16 %v198, %v197
    %v207 = vpack.c.b16 %v200, %v199
    %v208 = vpack.c.b16 %v202, %v201
    %vm215 = vcmask 785408
    %v217 = vsel %vm215, %v158, 0
    %v220 = vsel %vm215, %v159, 0
    %222 = vmatprep.subr.bf16.mxu0 0
    %223 = vmatpush1.bf16.msra.mxu0 %v203
    %224 = vmatprep.subr.bf16.mxu0 0
    %225 = vmatpush1.bf16.msra.mxu0 %v204
    %226 = vmatprep.subr.bf16.mxu0 0
    %227 = vmatpush1.bf16.msra.mxu0 %v205
    %228 = vmatprep.subr.bf16.mxu0 0
    %229 = vmatpush1.bf16.msra.mxu0 %v206
    %230 = vmatprep.subr.bf16.mxu0 0
    %231 = vmatpush1.bf16.msra.mxu0 %v207
    %232 = vmatprep.subr.bf16.mxu0 0
    %233 = vmatpush1.bf16.msra.mxu0 %v208
    %234 = vmatprep.subr.bf16.mxu0 0
    %235 = vmatpush1.bf16.msra.mxu0 0
    %236 = vmatprep.subr.bf16.mxu0 0
    %237 = vmatpush1.bf16.msra.mxu0 0
    %238 = vmatprep.subr.bf16.mxu0 0
    %239 = vmatpush1.bf16.msra.mxu0 0
    %240 = vmatprep.subr.bf16.mxu0 0
    %241 = vmatpush1.bf16.msra.mxu0 0
    %242 = vmatprep.subr.bf16.mxu0 0
    %243 = vmatpush1.bf16.msra.mxu0 0
    %244 = vmatprep.subr.bf16.mxu0 0
    %245 = vmatpush1.bf16.msra.mxu0 0
    %246 = vmatprep.subr.bf16.mxu0 0
    %247 = vmatpush1.bf16.msra.mxu0 0
    %248 = vmatprep.subr.bf16.mxu0 0
    %249 = vmatpush1.bf16.msra.mxu0 0
    %250 = vmatprep.subr.bf16.mxu0 0
    %251 = vmatpush1.bf16.msra.mxu0 0
    %252 = vmatprep.subr.bf16.mxu0 0
    %253 = vmatpush1.bf16.msra.mxu0 0
    %254 = vmatprep.mubr.bf16.mxu0 0
    %255 = vmatmul.mubr.bf16.gmra.mrb[0].mxu0 %v217
    %v256 = vpop.f32.mrb[0].mxu0
    %v257 = vadd.f32 %v177, %v256
    %v258 = vpop.f32.mrb[0].mxu0
    %v259 = vpop.f32.mrb[0].mxu0
    %v260 = vadd.f32 %v177, %v259
    %v261 = vpop.f32.mrb[0].mxu0
    %262 = vmatprep.mubr.bf16.mxu0 0
    %263 = vmatmul.mubr.bf16.gmra.mrb[0].mxu0 %v220
    %v264 = vpop.f32.mrb[0].mxu0
    %v265 = vadd.f32 %v177, %v264
    %v266 = vpop.f32.mrb[0].mxu0
    %v267 = vpop.f32.mrb[0].mxu0
    %v268 = vadd.f32 %v177, %v267
    %v269 = vpop.f32.mrb[0].mxu0
    %270 = vdwg.mxu0
    %v271 = vmax.f32 %v257, 0.0
    %v272 = vmax.f32 %v260, 0.0
    %v273 = vmax.f32 %v265, 0.0
    %v274 = vmax.f32 %v268, 0.0
    %v275 = vsel %vm126, %v272, -inf
    %v276 = vmax.f32 %v271, %v275
    %v277 = vrot.slane %v276, 4
    %v278 = vmax.f32 %v276, %v277
    %v279 = vrot.slane %v278, 2
    %v280 = vmax.f32 %v278, %v279
    %v281 = vrot.slane %v280, 1
    %v282 = vmax.f32 %v280, %v281
    %283 = vst [vmem:[#allocation2] sm:$0x1] %v282
    %v284 = vsel %vm126, %v274, -inf
    %v285 = vmax.f32 %v273, %v284
    %v286 = vrot.slane %v285, 4
    %v287 = vmax.f32 %v285, %v286
    %v288 = vrot.slane %v287, 2
    %v289 = vmax.f32 %v287, %v288
    %v290 = vrot.slane %v289, 1
    %v291 = vmax.f32 %v289, %v290
    %292 = vst [vmem:[#allocation2 + $0x1] sm:$0x1] %v291
    %vm293 = vcmask 1044480
    %v294 = vrot.slane %v94, 3
    %v295 = vrot.slane %v95, 3
    %v296 = vsel %vm293, %v294, %v295
    %v297 = vrot.slane %v96, 3
    %v298 = vsel %vm293, %v295, %v297
    %v299 = vrot.slane %v97, 3
    %v300 = vsel %vm293, %v297, %v299
    %v301 = vrot.slane %v98, 3
    %v302 = vsel %vm293, %v299, %v301
    %303 = vrot.lane.b32.xlu0 %v296, 96
    %v304 = vpop.permute.xlu0 %303
    %305 = vrot.lane.b32.xlu0 %v298, 96
    %v306 = vpop.permute.xlu0 %305
    %307 = vrot.lane.b32.xlu0 %v300, 96
    %v308 = vpop.permute.xlu0 %307
    %309 = vrot.lane.b32.xlu0 %v302, 96
    %v310 = vpop.permute.xlu0 %309
    %v315 = vsel %vm215, %v154, %v304
    %v316 = vsel %vm215, %v155, %v306
    %v317 = vsel %vm215, %v156, %v308
    %v318 = vsel %vm215, %v157, %v310
    %v319 = vpack.c.bf16 %v316, %v315
    %v320 = vpack.c.bf16 %v318, %v317
    %v321 = vld [vmem:[#allocation6] sm:$0xf]
    %v322 = vld [vmem:[#allocation6 + $0x4] sm:$0xf]
    %v323 = vld [vmem:[#allocation6 + $0x8] sm:$0xf]
    %v324 = vld [vmem:[#allocation6 + $0xc] sm:$0xf]
    %v325 = vld [vmem:[#allocation6 + $0x10] sm:$0xf]
    %v326 = vld [vmem:[#allocation6 + $0x14] sm:$0xf]
    %v327 = vld [vmem:[#allocation6 + $0x18] sm:$0xf]
    %v328 = vld [vmem:[#allocation6 + $0x1c] sm:$0xf]
    %v329 = vld [vmem:[#allocation6 + $0x20] sm:$0xf]
    %v330 = vld [vmem:[#allocation6 + $0x24] sm:$0xf]
    %v331 = vld [vmem:[#allocation6 + $0x28] sm:$0xf]
    %v332 = vld [vmem:[#allocation6 + $0x2c] sm:$0xf]
    %v333 = vld [vmem:[#allocation6 + $0x30] sm:$0xf]
    %v334 = vld [vmem:[#allocation6 + $0x34] sm:$0xf]
    %v335 = vld [vmem:[#allocation6 + $0x38] sm:$0xf]
    %v336 = vld [vmem:[#allocation6 + $0x3c] sm:$0xf]
    %v337 = vld [vmem:[%s5] sm:$0x1]
    %v339 = vlaneseq
    %v340 = vshrl.u32 %v339, 7
    %v341 = vsub.s32 0, %v340
    %v342 = vrot.slane %v337, %v341
    %v360 = vunpack.c.l.b16 %v321
    %v361 = vunpack.c.l.b16 %v322
    %v362 = vunpack.c.l.b16 %v323
    %v363 = vunpack.c.l.b16 %v324
    %v364 = vunpack.c.l.b16 %v325
    %v365 = vunpack.c.l.b16 %v326
    %v366 = vunpack.c.l.b16 %v327
    %v367 = vunpack.c.l.b16 %v328
    %v368 = vunpack.c.l.b16 %v329
    %v369 = vunpack.c.l.b16 %v330
    %v370 = vunpack.c.l.b16 %v331
    %v371 = vunpack.c.l.b16 %v332
    %v372 = vunpack.c.l.b16 %v333
    %v373 = vunpack.c.l.b16 %v334
    %v374 = vunpack.c.l.b16 %v335
    %v375 = vunpack.c.l.b16 %v336
    %v376 = vpack.c.b16 %v361, %v360
    %v377 = vpack.c.b16 %v363, %v362
    %v378 = vpack.c.b16 %v365, %v364
    %v379 = vpack.c.b16 %v367, %v366
    %v380 = vpack.c.b16 %v369, %v368
    %v381 = vpack.c.b16 %v371, %v370
    %v382 = vpack.c.b16 %v373, %v372
    %v383 = vpack.c.b16 %v375, %v374
    %392 = vmatprep.subr.bf16.mxu0 0
    %393 = vmatpush1.bf16.msra.mxu0 %v376
    %394 = vmatprep.subr.bf16.mxu0 0
    %395 = vmatpush1.bf16.msra.mxu0 %v377
    %396 = vmatprep.subr.bf16.mxu0 0
    %397 = vmatpush1.bf16.msra.mxu0 %v378
    %398 = vmatprep.subr.bf16.mxu0 0
    %399 = vmatpush1.bf16.msra.mxu0 %v379
    %400 = vmatprep.subr.bf16.mxu0 0
    %401 = vmatpush1.bf16.msra.mxu0 %v380
    %402 = vmatprep.subr.bf16.mxu0 0
    %403 = vmatpush1.bf16.msra.mxu0 %v381
    %404 = vmatprep.subr.bf16.mxu0 0
    %405 = vmatpush1.bf16.msra.mxu0 %v382
    %406 = vmatprep.subr.bf16.mxu0 0
    %407 = vmatpush1.bf16.msra.mxu0 %v383
    %408 = vmatprep.subr.bf16.mxu0 0
    %409 = vmatpush1.bf16.msra.mxu0 0
    %410 = vmatprep.subr.bf16.mxu0 0
    %411 = vmatpush1.bf16.msra.mxu0 0
    %412 = vmatprep.subr.bf16.mxu0 0
    %413 = vmatpush1.bf16.msra.mxu0 0
    %414 = vmatprep.subr.bf16.mxu0 0
    %415 = vmatpush1.bf16.msra.mxu0 0
    %416 = vmatprep.subr.bf16.mxu0 0
    %417 = vmatpush1.bf16.msra.mxu0 0
    %418 = vmatprep.subr.bf16.mxu0 0
    %419 = vmatpush1.bf16.msra.mxu0 0
    %420 = vmatprep.subr.bf16.mxu0 0
    %421 = vmatpush1.bf16.msra.mxu0 0
    %422 = vmatprep.subr.bf16.mxu0 0
    %423 = vmatpush1.bf16.msra.mxu0 0
    %424 = vmatprep.mubr.bf16.mxu0 0
    %425 = vmatmul.mubr.bf16.gmra.mrb[0].mxu0 %v319
    %v426 = vpop.f32.mrb[0].mxu0
    %v427 = vadd.f32 %v342, %v426
    %v428 = vpop.f32.mrb[0].mxu0
    %v429 = vpop.f32.mrb[0].mxu0
    %v430 = vadd.f32 %v342, %v429
    %v431 = vpop.f32.mrb[0].mxu0
    %432 = vmatprep.mubr.bf16.mxu0 0
    %433 = vmatmul.mubr.bf16.gmra.mrb[0].mxu0 %v320
    %v434 = vpop.f32.mrb[0].mxu0
    %v435 = vadd.f32 %v342, %v434
    %v436 = vpop.f32.mrb[0].mxu0
    %v437 = vpop.f32.mrb[0].mxu0
    %v438 = vadd.f32 %v342, %v437
    %v439 = vpop.f32.mrb[0].mxu0
    %440 = vdwg.mxu0
    %v441 = vmax.f32 %v427, 0.0
    %v442 = vmax.f32 %v430, 0.0
    %v443 = vmax.f32 %v435, 0.0
    %v444 = vmax.f32 %v438, 0.0
    %v445 = vsel %vm293, %v442, -inf
    %v446 = vmax.f32 %v441, %v445
    %v447 = vrot.slane %v446, 4
    %v448 = vmax.f32 %v446, %v447
    %v449 = vrot.slane %v448, 2
    %v450 = vmax.f32 %v448, %v449
    %v451 = vrot.slane %v450, 1
    %v452 = vmax.f32 %v450, %v451
    %453 = vst [vmem:[#allocation2 + $0x2] sm:$0x1] %v452
    %v454 = vsel %vm293, %v444, -inf
    %v455 = vmax.f32 %v443, %v454
    %v456 = vrot.slane %v455, 4
    %v457 = vmax.f32 %v455, %v456
    %v458 = vrot.slane %v457, 2
    %v459 = vmax.f32 %v457, %v458
    %v460 = vrot.slane %v459, 1
    %v461 = vmax.f32 %v459, %v460
    %462 = vst [vmem:[#allocation2 + $0x3] sm:$0x1] %v461
    %vm463 = vcmask 1043456
    %v464 = vrot.slane %v94, 4
    %v465 = vrot.slane %v95, 4
    %v466 = vsel %vm463, %v464, %v465
    %v467 = vrot.slane %v96, 4
    %v468 = vsel %vm463, %v465, %v467
    %v469 = vrot.slane %v97, 4
    %v470 = vsel %vm463, %v467, %v469
    %v471 = vrot.slane %v98, 4
    %v472 = vsel %vm463, %v469, %v471
    %v477 = vpack.c.bf16 %v468, %v466
    %v478 = vpack.c.bf16 %v472, %v470
    %v479 = vld [vmem:[#allocation8] sm:$0xf]
    %v480 = vld [vmem:[#allocation8 + $0x4] sm:$0xf]
    %v481 = vld [vmem:[#allocation8 + $0x8] sm:$0xf]
    %v482 = vld [vmem:[#allocation8 + $0xc] sm:$0xf]
    %v483 = vld [vmem:[#allocation8 + $0x10] sm:$0xf]
    %v484 = vld [vmem:[#allocation8 + $0x14] sm:$0xf]
    %v485 = vld [vmem:[#allocation8 + $0x18] sm:$0xf]
    %v486 = vld [vmem:[#allocation8 + $0x1c] sm:$0xf]
    %v487 = vld [vmem:[#allocation8 + $0x20] sm:$0xf]
    %v488 = vld [vmem:[#allocation8 + $0x24] sm:$0xf]
    %v489 = vld [vmem:[#allocation8 + $0x28] sm:$0xf]
    %v490 = vld [vmem:[#allocation8 + $0x2c] sm:$0xf]
    %v491 = vld [vmem:[#allocation8 + $0x30] sm:$0xf]
    %v492 = vld [vmem:[#allocation8 + $0x34] sm:$0xf]
    %v493 = vld [vmem:[#allocation8 + $0x38] sm:$0xf]
    %v494 = vld [vmem:[#allocation8 + $0x3c] sm:$0xf]
    %v495 = vld [vmem:[#allocation8 + $0x40] sm:$0xf]
    %v496 = vld [vmem:[#allocation8 + $0x44] sm:$0xf]
    %v497 = vld [vmem:[#allocation8 + $0x48] sm:$0xf]
    %v498 = vld [vmem:[#allocation8 + $0x4c] sm:$0xf]
    %v499 = vld [vmem:[%s6] sm:$0x1]
    %v501 = vlaneseq
    %v502 = vshrl.u32 %v501, 7
    %v503 = vsub.s32 0, %v502
    %v504 = vrot.slane %v499, %v503
    %v526 = vunpack.c.l.b16 %v479
    %v527 = vunpack.c.l.b16 %v480
    %v528 = vunpack.c.l.b16 %v481
    %v529 = vunpack.c.l.b16 %v482
    %v530 = vunpack.c.l.b16 %v483
    %v531 = vunpack.c.l.b16 %v484
    %v532 = vunpack.c.l.b16 %v485
    %v533 = vunpack.c.l.b16 %v486
    %v534 = vunpack.c.l.b16 %v487
    %v535 = vunpack.c.l.b16 %v488
    %v536 = vunpack.c.l.b16 %v489
    %v537 = vunpack.c.l.b16 %v490
    %v538 = vunpack.c.l.b16 %v491
    %v539 = vunpack.c.l.b16 %v492
    %v540 = vunpack.c.l.b16 %v493
    %v541 = vunpack.c.l.b16 %v494
    %v542 = vunpack.c.l.b16 %v495
    %v543 = vunpack.c.l.b16 %v496
    %v544 = vunpack.c.l.b16 %v497
    %v545 = vunpack.c.l.b16 %v498
    %v546 = vpack.c.b16 %v527, %v526
    %v547 = vpack.c.b16 %v529, %v528
    %v548 = vpack.c.b16 %v531, %v530
    %v549 = vpack.c.b16 %v533, %v532
    %v550 = vpack.c.b16 %v535, %v534
    %v551 = vpack.c.b16 %v537, %v536
    %v552 = vpack.c.b16 %v539, %v538
    %v553 = vpack.c.b16 %v541, %v540
    %v554 = vpack.c.b16 %v543, %v542
    %v555 = vpack.c.b16 %v545, %v544
    %v567 = vsel %vm148, %v477, 0
    %v570 = vsel %vm148, %v478, 0
    %572 = vmatprep.subr.bf16.mxu0 0
    %573 = vmatpush1.bf16.msra.mxu0 %v546
    %574 = vmatprep.subr.bf16.mxu0 0
    %575 = vmatpush1.bf16.msra.mxu0 %v547
    %576 = vmatprep.subr.bf16.mxu0 0
    %577 = vmatpush1.bf16.msra.mxu0 %v548
    %578 = vmatprep.subr.bf16.mxu0 0
    %579 = vmatpush1.bf16.msra.mxu0 %v549
    %580 = vmatprep.subr.bf16.mxu0 0
    %581 = vmatpush1.bf16.msra.mxu0 %v550
    %582 = vmatprep.subr.bf16.mxu0 0
    %583 = vmatpush1.bf16.msra.mxu0 %v551
    %584 = vmatprep.subr.bf16.mxu0 0
    %585 = vmatpush1.bf16.msra.mxu0 %v552
    %586 = vmatprep.subr.bf16.mxu0 0
    %587 = vmatpush1.bf16.msra.mxu0 %v553
    %588 = vmatprep.subr.bf16.mxu0 0
    %589 = vmatpush1.bf16.msra.mxu0 %v554
    %590 = vmatprep.subr.bf16.mxu0 0
    %591 = vmatpush1.bf16.msra.mxu0 %v555
    %592 = vmatprep.subr.bf16.mxu0 0
    %593 = vmatpush1.bf16.msra.mxu0 0
    %594 = vmatprep.subr.bf16.mxu0 0
    %595 = vmatpush1.bf16.msra.mxu0 0
    %596 = vmatprep.subr.bf16.mxu0 0
    %597 = vmatpush1.bf16.msra.mxu0 0
    %598 = vmatprep.subr.bf16.mxu0 0
    %599 = vmatpush1.bf16.msra.mxu0 0
    %600 = vmatprep.subr.bf16.mxu0 0
    %601 = vmatpush1.bf16.msra.mxu0 0
    %602 = vmatprep.subr.bf16.mxu0 0
    %603 = vmatpush1.bf16.msra.mxu0 0
    %604 = vmatprep.mubr.bf16.mxu0 %v567
    %605 = vmatmul.mubr.bf16.gmra.mrb[0].mxu0 %v319
    %v606 = vpop.f32.mrb[0].mxu0
    %v607 = vadd.f32 %v504, %v606
    %v608 = vpop.f32.mrb[0].mxu0
    %v609 = vpop.f32.mrb[0].mxu0
    %v610 = vadd.f32 %v504, %v609
    %v611 = vpop.f32.mrb[0].mxu0
    %612 = vmatprep.mubr.bf16.mxu0 %v570
    %613 = vmatmul.mubr.bf16.gmra.mrb[0].mxu0 %v320
    %v614 = vpop.f32.mrb[0].mxu0
    %v615 = vadd.f32 %v504, %v614
    %v616 = vpop.f32.mrb[0].mxu0
    %v617 = vpop.f32.mrb[0].mxu0
    %v618 = vadd.f32 %v504, %v617
    %v619 = vpop.f32.mrb[0].mxu0
    %620 = vdwg.mxu0
    %v621 = vmax.f32 %v607, 0.0
    %v622 = vmax.f32 %v610, 0.0
    %v623 = vmax.f32 %v615, 0.0
    %v624 = vmax.f32 %v618, 0.0
    %v625 = vsel %vm463, %v622, -inf
    %v626 = vmax.f32 %v621, %v625
    %v627 = vrot.slane %v626, 4
    %v628 = vmax.f32 %v626, %v627
    %v629 = vrot.slane %v628, 2
    %v630 = vmax.f32 %v628, %v629
    %v631 = vrot.slane %v630, 1
    %v632 = vmax.f32 %v630, %v631
    %633 = vst [vmem:[#allocation2 + $0x4] sm:$0x1] %v632
    %v634 = vsel %vm463, %v624, -inf
    %v635 = vmax.f32 %v623, %v634
    %v636 = vrot.slane %v635, 4
    %v637 = vmax.f32 %v635, %v636
    %v638 = vrot.slane %v637, 2
    %v639 = vmax.f32 %v637, %v638
    %v640 = vrot.slane %v639, 1
    %v641 = vmax.f32 %v639, %v640
    %642 = vst [vmem:[#allocation2 + $0x5] sm:$0x1] %v641
    %v643 = vld [vmem:[#allocation2] sm:$0x3f]
    %v645 = vcombine.high %v643, %v643
    %v647 = vunpack.c.l.s4 1983009808
    %v648 = vunpack.c.0.s8 %v647
    %v649 = vlaneseq
    %v650 = vshrl.u32 %v649, 7
    %v651 = vsub.s32 %v648, %v650
    %v652 = vrot.slane %v643, %v651
    %v654 = vunpack.c.l.s4 1983009808
    %v655 = vunpack.c.0.s8 %v654
    %v656 = vlaneseq
    %v657 = vshrl.u32 %v656, 7
    %v658 = vsub.s32 %v655, %v657
    %v659 = vrot.slane %v645, %v658
    %v660 = vcombine.high %v652, %v652
    %v664 = vpack.c.bf16 %v652, %v652
    %v665 = vpack.c.bf16 %v660, %v660
    %v666 = vpack.c.bf16 %v659, %v659
    %v667 = vld [vmem:[#allocation9] sm:$0xf]
    %v668 = vld [vmem:[#allocation9 + $0x4] sm:$0xf]
    %v669 = vld [vmem:[#allocation9 + $0x8] sm:$0xf]
    %v670 = vld [vmem:[#allocation9 + $0xc] sm:$0xf]
    %v671 = vld [vmem:[#allocation9 + $0x10] sm:$0xf]
    %v672 = vld [vmem:[#allocation9 + $0x14] sm:$0xf]
    %v673 = vld [vmem:[#allocation9 + $0x18] sm:$0xf]
    %v674 = vld [vmem:[#allocation9 + $0x1c] sm:$0xf]
    %v675 = vld [vmem:[#allocation9 + $0x20] sm:$0xf]
    %v676 = vld [vmem:[#allocation9 + $0x24] sm:$0xf]
    %v677 = vld [vmem:[#allocation9 + $0x28] sm:$0xf]
    %v678 = vld [vmem:[#allocation9 + $0x2c] sm:$0xf]
    %v679 = vld [vmem:[#allocation9 + $0x30] sm:$0xf]
    %v680 = vld [vmem:[#allocation9 + $0x34] sm:$0xf]
    %v681 = vld [vmem:[#allocation9 + $0x38] sm:$0xf]
    %v682 = vld [vmem:[#allocation9 + $0x3c] sm:$0xf]
    %v683 = vld [vmem:[#allocation9 + $0x40] sm:$0xf]
    %v684 = vld [vmem:[#allocation9 + $0x44] sm:$0xf]
    %v685 = vld [vmem:[#allocation9 + $0x48] sm:$0xf]
    %v686 = vld [vmem:[#allocation9 + $0x4c] sm:$0xf]
    %v687 = vld [vmem:[#allocation9 + $0x50] sm:$0xf]
    %v688 = vld [vmem:[#allocation9 + $0x54] sm:$0xf]
    %v689 = vld [vmem:[#allocation9 + $0x58] sm:$0xf]
    %v690 = vld [vmem:[#allocation9 + $0x5c] sm:$0xf]
    %v691 = vld [vmem:[#allocation9 + $0x60] sm:$0xf]
    %v692 = vld [vmem:[#allocation9 + $0x64] sm:$0xf]
    %v693 = vld [vmem:[#allocation9 + $0x68] sm:$0xf]
    %v694 = vld [vmem:[#allocation9 + $0x6c] sm:$0xf]
    %v695 = vld [vmem:[#allocation9 + $0x70] sm:$0xf]
    %v696 = vld [vmem:[#allocation9 + $0x74] sm:$0xf]
    %v697 = vld [vmem:[#allocation9 + $0x78] sm:$0xf]
    %v698 = vld [vmem:[#allocation9 + $0x7c] sm:$0xf]
    %v699 = vld [vmem:[#allocation9 + $0x80] sm:$0xf]
    %v700 = vld [vmem:[#allocation9 + $0x84] sm:$0xf]
    %v701 = vld [vmem:[#allocation9 + $0x88] sm:$0xf]
    %v702 = vld [vmem:[#allocation9 + $0x8c] sm:$0xf]
    %v703 = vld [vmem:[#allocation9 + $0x90] sm:$0xf]
    %v704 = vld [vmem:[#allocation9 + $0x94] sm:$0xf]
    %v705 = vld [vmem:[#allocation9 + $0x98] sm:$0xf]
    %v706 = vld [vmem:[#allocation9 + $0x9c] sm:$0xf]
    %v707 = vld [vmem:[#allocation9 + $0xa0] sm:$0xf]
    %v708 = vld [vmem:[#allocation9 + $0xa4] sm:$0xf]
    %v709 = vld [vmem:[#allocation9 + $0xa8] sm:$0xf]
    %v710 = vld [vmem:[#allocation9 + $0xac] sm:$0xf]
    %v711 = vld [vmem:[#allocation9 + $0xb0] sm:$0xf]
    %v712 = vld [vmem:[#allocation9 + $0xb4] sm:$0xf]
    %v713 = vld [vmem:[#allocation9 + $0xb8] sm:$0xf]
    %v714 = vld [vmem:[#allocation9 + $0xbc] sm:$0xf]
    %v715 = vld [vmem:[%s8] sm:$0x1]
    %v717 = vlaneseq
    %v718 = vshrl.u32 %v717, 7
    %v719 = vsub.s32 0, %v718
    %v720 = vrot.slane %v715, %v719
    %v770 = vunpack.c.l.b16 %v667
    %v771 = vunpack.c.l.b16 %v668
    %v772 = vunpack.c.l.b16 %v669
    %v773 = vunpack.c.l.b16 %v670
    %v774 = vunpack.c.l.b16 %v671
    %v775 = vunpack.c.l.b16 %v672
    %v776 = vunpack.c.l.b16 %v673
    %v777 = vunpack.c.l.b16 %v674
    %v778 = vunpack.c.l.b16 %v675
    %v779 = vunpack.c.l.b16 %v676
    %v780 = vunpack.c.l.b16 %v677
    %v781 = vunpack.c.l.b16 %v678
    %v782 = vunpack.c.l.b16 %v679
    %v783 = vunpack.c.l.b16 %v680
    %v784 = vunpack.c.l.b16 %v681
    %v785 = vunpack.c.l.b16 %v682
    %v786 = vunpack.c.l.b16 %v683
    %v787 = vunpack.c.l.b16 %v684
    %v788 = vunpack.c.l.b16 %v685
    %v789 = vunpack.c.l.b16 %v686
    %v790 = vunpack.c.l.b16 %v687
    %v791 = vunpack.c.l.b16 %v688
    %v792 = vunpack.c.l.b16 %v689
    %v793 = vunpack.c.l.b16 %v690
    %v794 = vunpack.c.l.b16 %v691
    %v795 = vunpack.c.l.b16 %v692
    %v796 = vunpack.c.l.b16 %v693
    %v797 = vunpack.c.l.b16 %v694
    %v798 = vunpack.c.l.b16 %v695
    %v799 = vunpack.c.l.b16 %v696
    %v800 = vunpack.c.l.b16 %v697
    %v801 = vunpack.c.l.b16 %v698
    %v802 = vunpack.c.l.b16 %v699
    %v803 = vunpack.c.l.b16 %v700
    %v804 = vunpack.c.l.b16 %v701
    %v805 = vunpack.c.l.b16 %v702
    %v806 = vunpack.c.l.b16 %v703
    %v807 = vunpack.c.l.b16 %v704
    %v808 = vunpack.c.l.b16 %v705
    %v809 = vunpack.c.l.b16 %v706
    %v810 = vunpack.c.l.b16 %v707
    %v811 = vunpack.c.l.b16 %v708
    %v812 = vunpack.c.l.b16 %v709
    %v813 = vunpack.c.l.b16 %v710
    %v814 = vunpack.c.l.b16 %v711
    %v815 = vunpack.c.l.b16 %v712
    %v816 = vunpack.c.l.b16 %v713
    %v817 = vunpack.c.l.b16 %v714
    %v818 = vpack.c.b16 %v771, %v770
    %v819 = vpack.c.b16 %v773, %v772
    %v820 = vpack.c.b16 %v775, %v774
    %v821 = vpack.c.b16 %v777, %v776
    %v822 = vpack.c.b16 %v779, %v778
    %v823 = vpack.c.b16 %v781, %v780
    %v824 = vpack.c.b16 %v783, %v782
    %v825 = vpack.c.b16 %v785, %v784
    %v826 = vpack.c.b16 %v787, %v786
    %v827 = vpack.c.b16 %v789, %v788
    %v828 = vpack.c.b16 %v791, %v790
    %v829 = vpack.c.b16 %v793, %v792
    %v830 = vpack.c.b16 %v795, %v794
    %v831 = vpack.c.b16 %v797, %v796
    %v832 = vpack.c.b16 %v799, %v798
    %v833 = vpack.c.b16 %v801, %v800
    %v834 = vpack.c.b16 %v803, %v802
    %v835 = vpack.c.b16 %v805, %v804
    %v836 = vpack.c.b16 %v807, %v806
    %v837 = vpack.c.b16 %v809, %v808
    %v838 = vpack.c.b16 %v811, %v810
    %v839 = vpack.c.b16 %v813, %v812
    %v840 = vpack.c.b16 %v815, %v814
    %v841 = vpack.c.b16 %v817, %v816
    %866 = vmatprep.subr.bf16.mxu0 0
    %867 = vmatpush1.bf16.msra.mxu0 %v818
    %868 = vmatprep.subr.bf16.mxu0 0
    %869 = vmatpush1.bf16.msra.mxu0 %v819
    %870 = vmatprep.subr.bf16.mxu0 0
    %871 = vmatpush1.bf16.msra.mxu0 %v820
    %872 = vmatprep.subr.bf16.mxu0 0
    %873 = vmatpush1.bf16.msra.mxu0 %v821
    %874 = vmatprep.subr.bf16.mxu0 0
    %875 = vmatpush1.bf16.msra.mxu0 %v822
    %876 = vmatprep.subr.bf16.mxu0 0
    %877 = vmatpush1.bf16.msra.mxu0 %v823
    %878 = vmatprep.subr.bf16.mxu0 0
    %879 = vmatpush1.bf16.msra.mxu0 %v824
    %880 = vmatprep.subr.bf16.mxu0 0
    %881 = vmatpush1.bf16.msra.mxu0 %v825
    %882 = vmatprep.subr.bf16.mxu0 0
    %883 = vmatpush1.bf16.msra.mxu0 %v826
    %884 = vmatprep.subr.bf16.mxu0 0
    %885 = vmatpush1.bf16.msra.mxu0 %v827
    %886 = vmatprep.subr.bf16.mxu0 0
    %887 = vmatpush1.bf16.msra.mxu0 %v828
    %888 = vmatprep.subr.bf16.mxu0 0
    %889 = vmatpush1.bf16.msra.mxu0 %v829
    %890 = vmatprep.subr.bf16.mxu0 0
    %891 = vmatpush1.bf16.msra.mxu0 %v830
    %892 = vmatprep.subr.bf16.mxu0 0
    %893 = vmatpush1.bf16.msra.mxu0 %v831
    %894 = vmatprep.subr.bf16.mxu0 0
    %895 = vmatpush1.bf16.msra.mxu0 %v832
    %896 = vmatprep.subr.bf16.mxu0 0
    %897 = vmatpush1.bf16.msra.mxu0 %v833
    %898 = vmatprep.mubr.bf16.mxu0 %v665
    %899 = vmatmul.mubr.bf16.gmra.mrb[0].mxu0 %v664
    %v900 = vpop.f32.mrb[0].mxu0
    %v901 = vadd.f32 %v720, %v900
    %v902 = vpop.f32.mrb[0].mxu0
    %v903 = vpop.f32.mrb[0].mxu0
    %v904 = vpop.f32.mrb[0].mxu0
    %905 = vdwg.mxu0
    %906 = vmatprep.subr.bf16.mxu0 0
    %907 = vmatpush1.bf16.msra.mxu0 %v834
    %908 = vmatprep.subr.bf16.mxu0 0
    %909 = vmatpush1.bf16.msra.mxu0 %v835
    %910 = vmatprep.subr.bf16.mxu0 0
    %911 = vmatpush1.bf16.msra.mxu0 %v836
    %912 = vmatprep.subr.bf16.mxu0 0
    %913 = vmatpush1.bf16.msra.mxu0 %v837
    %914 = vmatprep.subr.bf16.mxu0 0
    %915 = vmatpush1.bf16.msra.mxu0 %v838
    %916 = vmatprep.subr.bf16.mxu0 0
    %917 = vmatpush1.bf16.msra.mxu0 %v839
    %918 = vmatprep.subr.bf16.mxu0 0
    %919 = vmatpush1.bf16.msra.mxu0 %v840
    %920 = vmatprep.subr.bf16.mxu0 0
    %921 = vmatpush1.bf16.msra.mxu0 %v841
    %922 = vmatprep.subr.bf16.mxu0 0
    %923 = vmatpush1.bf16.msra.mxu0 0
    %924 = vmatprep.subr.bf16.mxu0 0
    %925 = vmatpush1.bf16.msra.mxu0 0
    %926 = vmatprep.subr.bf16.mxu0 0
    %927 = vmatpush1.bf16.msra.mxu0 0
    %928 = vmatprep.subr.bf16.mxu0 0
    %929 = vmatpush1.bf16.msra.mxu0 0
    %930 = vmatprep.subr.bf16.mxu0 0
    %931 = vmatpush1.bf16.msra.mxu0 0
    %932 = vmatprep.subr.bf16.mxu0 0
    %933 = vmatpush1.bf16.msra.mxu0 0
    %934 = vmatprep.subr.bf16.mxu0 0
    %935 = vmatpush1.bf16.msra.mxu0 0
    %936 = vmatprep.subr.bf16.mxu0 0
    %937 = vmatpush1.bf16.msra.mxu0 0
    %938 = vmatprep.mubr.bf16.mxu0 0
    %939 = vmatmul.mubr.bf16.gmra.mrb[0].mxu0 %v666
    %v940 = vpop.f32.mrb[0].mxu0
    %v941 = vadd.f32 %v901, %v940
    %v942 = vpop.f32.mrb[0].mxu0
    %v943 = vpop.f32.mrb[0].mxu0
    %v944 = vpop.f32.mrb[0].mxu0
    %945 = vdwg.mxu0
    %946 = vst [vmem:[#allocation11] sm:$0x3] %v941
    // Predicated region
    $region54: #{tpu_custom_call.1} parent=1 // pred_check
      _
    $region55: #{tpu_custom_call.1} parent=1 // pred_check_branch
      %948 = sbr.rel (0) target = $region57
    $region56: #{tpu_custom_call.1} parent=1 // pred_region
      %s950 = ssub.s32 32, 32
      %951 = vsyncadd [#allocation5], %s950
      %s953 = sshll.u32 [#allocation11], 4
      %s954 = int_to_ptr.vmem [resolvable:$true] %s953
      %956 = dma.vmem_to_hbm [thread:$0]  %s954, 32, %s9, [#allocation5]
    $region57: #{tpu_custom_call.1} parent=1 // pred_fallthru
      _
    // Predicated region
    $region58: #{tpu_custom_call.1} parent=1 // pred_check
      _
    $region59: #{tpu_custom_call.1} parent=1 // pred_check_branch
      %958 = sbr.rel (0) target = $region61
    $region60: #{tpu_custom_call.1} parent=1 // pred_region
      %959 = dma.done [#allocation5], 32
    $region61: #{tpu_custom_call.1} parent=1 // pred_fallthru
      _
    %960 = vsyncpa [#allocation4], 1
    %961 = vsyncpa [#allocation7], 1
    %962 = vsyncpa [#allocation10], 1
    %963 = vsyncpa [#allocation5], 1

</llo_original>
